<compile_context>
chip_gen: v7x
topology: tpu7x:2x2x1
jax: 0.10.0
libtpu: 0.0.40
codegen_flags: <defaults>
</compile_context>

<pallas_src>
import functools

import numpy as np
import jax
import jax.numpy as jnp
from jax.experimental import pallas as pl
from jax.experimental.pallas import tpu as pltpu

GROUPS = 4          # GroupNorm num_groups (module default)
EPS = 1e-5          # GroupNorm eps (module default)


def _channel_gate_kernel(x_ref, w_ref, b_ref, y_ref, s_ref, *,
                         inv_hw, cg, groups_in_block, var_scale, eps):
    # x_ref: (1, CB, HW)  channel block (all C, or one group of Cg channels)
    # w_ref, b_ref: (CB, 1)  per-channel GroupNorm affine params (f32)
    # y_ref: (1, CB, HW)  gated output
    # s_ref: (1, CB, 1)   per-sample sigmoid gate (for channel_wt)
    x = x_ref[0].astype(jnp.float32)                       # (CB, HW)
    w = w_ref[...]                                         # (CB, 1)
    b = b_ref[...]                                         # (CB, 1)
    cb = x.shape[0]

    # Global average / max pooling over the full spatial extent (lane axis).
    avg = jnp.sum(x, axis=-1, keepdims=True) * inv_hw      # (CB, 1)
    mx = jnp.max(x, axis=-1, keepdims=True)                # (CB, 1)
    p = jnp.concatenate([avg, mx], axis=-1)                # (CB, 2): both pools

    # Per-group statistics over contiguous groups of cg channels (sublane
    # axis), computed for both pooled vectors in one masked reduction each.
    if groups_in_block == 1:
        mean = jnp.sum(p, axis=0, keepdims=True) * (1.0 / cg)              # (1, 2)
        diff = p - mean
        var = jnp.sum(diff * diff, axis=0, keepdims=True) * (var_scale / cg)
    else:
        row_id = jax.lax.broadcasted_iota(jnp.int32, (cb, 1), 0)           # (CB, 1)
        mean = jnp.zeros_like(p)
        for g in range(groups_in_block):
            mask = (row_id >= g * cg) & (row_id < (g + 1) * cg)            # (CB, 1)
            gsum = jnp.sum(jnp.where(mask, p, 0.0), axis=0, keepdims=True)  # (1, 2)
            mean = mean + jnp.where(mask, gsum * (1.0 / cg), 0.0)
        diff = p - mean
        d2 = diff * diff
        var = jnp.zeros_like(p)
        for g in range(groups_in_block):
            mask = (row_id >= g * cg) & (row_id < (g + 1) * cg)
            gsum = jnp.sum(jnp.where(mask, d2, 0.0), axis=0, keepdims=True)
            var = var + jnp.where(mask, gsum * (var_scale / cg), 0.0)

    # torch.var default is unbiased: var_scale folds the (cg-1) divisor in.
    normed = diff * jax.lax.rsqrt(var + eps) * w + b        # (CB, 2)
    att = normed[:, 0:1] + normed[:, 1:2]                   # channel_att_sum, (CB, 1)
    scale = jax.nn.sigmoid(att)                             # (CB, 1) f32

    y_ref[0] = (x * scale).astype(y_ref.dtype)              # broadcast over lanes
    s_ref[0] = scale


def channel_gate(x, weight, bias, num_groups=GROUPS):
    """x: (N, C, H, W); weight/bias: (1, C, 1, 1). Returns (y, channel_wt list)."""
    N, C, H, W = x.shape
    G = num_groups
    assert C % G == 0
    Cg = C // G
    HW = H * W

    x3 = x.reshape(N, C, HW)
    w = weight.reshape(C, 1).astype(jnp.float32)
    b = bias.reshape(C, 1).astype(jnp.float32)

    # torch.var(unbiased=True) divides by (Cg - 1); Cg == 1 yields NaN in torch
    # as well, so mirror that behaviour rather than guard it.
    var_scale = float(Cg) / float(Cg - 1) if Cg > 1 else float("nan")

    group_split = (Cg % 8 == 0)
    if group_split:
        # Per-group blocks: denser pipeline, smaller VMEM working set,
        # N*G parallel steps (good for v7x megacore).
        CB = Cg
        grid = (N, G)
        in_specs = [
            pl.BlockSpec((1, Cg, HW), lambda n, g: (n, g, 0)),
            pl.BlockSpec((Cg, 1), lambda n, g: (g, 0)),
            pl.BlockSpec((Cg, 1), lambda n, g: (g, 0)),
        ]
        out_specs = (
            pl.BlockSpec((1, Cg, HW), lambda n, g: (n, g, 0)),
            pl.BlockSpec((1, Cg, 1), lambda n, g: (n, g, 0)),
        )
        dims = ("parallel", "parallel")
        groups_in_block = 1
    else:
        # Whole-sample channel block keeps sublanes full when Cg < 8.
        CB = C
        grid = (N,)
        in_specs = [
            pl.BlockSpec((1, C, HW), lambda n: (n, 0, 0)),
            pl.BlockSpec((C, 1), lambda n: (0, 0)),
            pl.BlockSpec((C, 1), lambda n: (0, 0)),
        ]
        out_specs = (
            pl.BlockSpec((1, C, HW), lambda n: (n, 0, 0)),
            pl.BlockSpec((1, C, 1), lambda n: (n, 0, 0)),
        )
        dims = ("parallel",)
        groups_in_block = G

    # Explicit VMEM budget: double-buffered input + output blocks plus slack,
    # capped at 48 MiB so it is valid on v7x (64 MiB physical) and leaves the
    # pipeline 2-deep on v5e/v6e.
    block_bytes = CB * HW * np.dtype(x.dtype).itemsize
    need = 4 * block_bytes + (2 << 20)
    vmem_limit = int(min(max(need, 16 << 20), 48 << 20))

    kernel = functools.partial(
        _channel_gate_kernel,
        inv_hw=1.0 / HW, cg=Cg, groups_in_block=groups_in_block,
        var_scale=var_scale, eps=EPS)

    y3, scale = pl.pallas_call(
        kernel,
        out_shape=(
            jax.ShapeDtypeStruct((N, C, HW), x.dtype),
            jax.ShapeDtypeStruct((N, C, 1), jnp.float32),
        ),
        grid_spec=pltpu.PrefetchScalarGridSpec(
            num_scalar_prefetch=0,
            grid=grid,
            in_specs=in_specs,
            out_specs=out_specs,
        ),
        compiler_params=pltpu.CompilerParams(
            dimension_semantics=dims,
            vmem_limit_bytes=vmem_limit),
    )(x3, w, b)

    y = y3.reshape(N, C, H, W)
    scale_nc = scale.reshape(N, C)
    # torch: torch.mean(sigmoid(att).view(N, 1, C), dim=0).squeeze().tolist()
    # Single device->host transfer instead of C separate syncs.
    channel_wt = np.asarray(jnp.mean(scale_nc, axis=0)).tolist()
    return y, channel_wt


def reference(x, weight, bias, G=GROUPS, eps=EPS):
    """Pure-JAX replica of the PyTorch forward, for verification."""
    N, C, H, W = x.shape
    xf = x.astype(jnp.float32)

    def gn(p):  # p: (N, C) pooled values
        pv = p.reshape(N, G, -1)
        mean = pv.mean(-1, keepdims=True)
        var = pv.var(-1, keepdims=True, ddof=1)        # unbiased, as torch.var
        out = (pv - mean) / jnp.sqrt(var + eps)
        return out.reshape(N, C) * weight.reshape(1, C) + bias.reshape(1, C)

    avg = xf.mean(axis=(2, 3))
    mx = xf.max(axis=(2, 3))
    att = gn(avg) + gn(mx)
    scale = jax.nn.sigmoid(att)                        # (N, C)
    y = (xf * scale[:, :, None, None]).astype(x.dtype)
    channel_wt = jnp.mean(scale, axis=0)
    return y, channel_wt


if __name__ == "__main__":
    key = jax.random.PRNGKey(0)
    kx, kw, kb, kx2, kw2, kb2 = jax.random.split(key, 6)

    # Case 1: C=8, G=4 -> Cg=2 (<8): whole-sample (C, HW) block, grid (N,).
    N, C, H, W = 2, 8, 16, 16
    x = jax.random.normal(kx, (N, C, H, W), dtype=jnp.float32)
    weight = 1.0 + 0.1 * jax.random.normal(kw, (1, C, 1, 1), dtype=jnp.float32)
    bias = 0.1 * jax.random.normal(kb, (1, C, 1, 1), dtype=jnp.float32)

    y, channel_wt = channel_gate(x, weight, bias)
    y = jax.block_until_ready(y)
    y_ref, wt_ref = reference(x, weight, bias)
    assert jnp.allclose(y, y_ref, atol=1e-5, rtol=1e-5), "gated output mismatch"
    assert jnp.allclose(jnp.asarray(channel_wt), wt_ref, atol=1e-5, rtol=1e-5), \
        "channel_wt mismatch"
    assert isinstance(channel_wt, list) and len(channel_wt) == C

    # Case 2: C=64, G=4 -> Cg=16 (>=8): per-group blocks, grid (N, G).
    N2, C2, H2, W2 = 2, 64, 16, 16
    x2 = jax.random.normal(kx2, (N2, C2, H2, W2), dtype=jnp.float32)
    w2 = 1.0 + 0.1 * jax.random.normal(kw2, (1, C2, 1, 1), dtype=jnp.float32)
    b2 = 0.1 * jax.random.normal(kb2, (1, C2, 1, 1), dtype=jnp.float32)

    y2, wt2 = channel_gate(x2, w2, b2)
    y2 = jax.block_until_ready(y2)
    y2_ref, wt2_ref = reference(x2, w2, b2)
    assert jnp.allclose(y2, y2_ref, atol=1e-5, rtol=1e-5), "case2 output mismatch"
    assert jnp.allclose(jnp.asarray(wt2), wt2_ref, atol=1e-5, rtol=1e-5), \
        "case2 channel_wt mismatch"
    assert isinstance(wt2, list) and len(wt2) == C2

    print("KERNEL_OK")
</pallas_src>

<mosaic_0001>
module attributes {stable_mosaic.version = 11 : i64} {
  func.func @_channel_gate_kernel(%arg0: i32, %arg1: memref<1x8x256xf32, #tpu.memory_space<vmem>>, %arg2: memref<8x1xf32, #tpu.memory_space<vmem>>, %arg3: memref<8x1xf32, #tpu.memory_space<vmem>>, %arg4: memref<1x8x256xf32, #tpu.memory_space<vmem>>, %arg5: memref<1x8x1xf32, #tpu.memory_space<vmem>>) attributes {dimension_semantics = [#tpu.dimension_semantics<parallel>], iteration_bounds = array<i64: 2>, scalar_prefetch = 0 : i64, scratch_operands = 0 : i64, tpu.core_type = #tpu.core_type<tc>, window_params = [{transform_indices = @transform_0, window_bounds = array<i64: 1, 8, 256>}, {pipeline_mode = #tpu.pipeline_mode<synchronous>, transform_indices = @transform_1, window_bounds = array<i64: 8, 1>}, {pipeline_mode = #tpu.pipeline_mode<synchronous>, transform_indices = @transform_2, window_bounds = array<i64: 8, 1>}, {transform_indices = @transform_3, window_bounds = array<i64: 1, 8, 256>}, {transform_indices = @transform_4, window_bounds = array<i64: 1, 8, 1>}]} {
    %c0 = arith.constant 0 : index
    %c0_0 = arith.constant 0 : index
    %c0_1 = arith.constant 0 : index
    %0 = vector.load %arg1[%c0, %c0_0, %c0_1] : memref<1x8x256xf32, #tpu.memory_space<vmem>>, vector<1x8x256xf32>
    %1 = vector.shape_cast %0 : vector<1x8x256xf32> to vector<8x256xf32>
    %c0_2 = arith.constant 0 : index
    %c0_3 = arith.constant 0 : index
    %2 = vector.load %arg2[%c0_2, %c0_3] : memref<8x1xf32, #tpu.memory_space<vmem>>, vector<8x1xf32>
    %c0_4 = arith.constant 0 : index
    %c0_5 = arith.constant 0 : index
    %3 = vector.load %arg3[%c0_4, %c0_5] : memref<8x1xf32, #tpu.memory_space<vmem>>, vector<8x1xf32>
    %cst = arith.constant dense<0.000000e+00> : vector<8xf32>
    %4 = vector.multi_reduction <add>, %1, %cst [1] : vector<8x256xf32> to vector<8xf32>
    %5 = vector.shape_cast %4 : vector<8xf32> to vector<8x1xf32>
    %cst_6 = arith.constant 3.906250e-03 : f32
    %6 = vector.broadcast %cst_6 : f32 to vector<8x1xf32>
    %7 = arith.mulf %5, %6 : vector<8x1xf32>
    %cst_7 = arith.constant dense<0xFF800000> : vector<8xf32>
    %8 = vector.multi_reduction <maximumf>, %1, %cst_7 [1] : vector<8x256xf32> to vector<8xf32>
    %9 = vector.shape_cast %8 : vector<8xf32> to vector<8x1xf32>
    %10 = tpu.concatenate %7, %9 in 1 : vector<8x1xf32>, vector<8x1xf32> -> vector<8x2xf32>
    %11 = tpu.iota {dimensions = array<i32: 0>} : vector<8x1xi32>
    %cst_8 = arith.constant 0.000000e+00 : f32
    %12 = vector.broadcast %cst_8 : f32 to vector<8x2xf32>
    %c0_i32 = arith.constant 0 : i32
    %13 = vector.broadcast %c0_i32 : i32 to vector<8x1xi32>
    %14 = arith.cmpi sge, %11, %13 : vector<8x1xi32>
    %c2_i32 = arith.constant 2 : i32
    %15 = vector.broadcast %c2_i32 : i32 to vector<8x1xi32>
    %16 = arith.cmpi slt, %11, %15 : vector<8x1xi32>
    %17 = arith.andi %14, %16 : vector<8x1xi1>
    %cst_9 = arith.constant 0.000000e+00 : f32
    %18 = vector.shape_cast %17 : vector<8x1xi1> to vector<8x1xi1>
    %19 = vector.broadcast %18 : vector<8x1xi1> to vector<8x2xi1>
    %20 = vector.broadcast %cst_9 : f32 to vector<8x2xf32>
    %21 = arith.select %19, %10, %20 : vector<8x2xi1>, vector<8x2xf32>
    %cst_10 = arith.constant dense<0.000000e+00> : vector<2xf32>
    %22 = vector.multi_reduction <add>, %21, %cst_10 [0] : vector<8x2xf32> to vector<2xf32>
    %23 = vector.shape_cast %22 : vector<2xf32> to vector<1x2xf32>
    %cst_11 = arith.constant 5.000000e-01 : f32
    %24 = vector.broadcast %cst_11 : f32 to vector<1x2xf32>
    %25 = arith.mulf %23, %24 : vector<1x2xf32>
    %cst_12 = arith.constant 0.000000e+00 : f32
    %26 = vector.shape_cast %17 : vector<8x1xi1> to vector<8x1xi1>
    %27 = vector.broadcast %26 : vector<8x1xi1> to vector<8x2xi1>
    %28 = vector.shape_cast %25 : vector<1x2xf32> to vector<1x2xf32>
    %29 = vector.broadcast %28 : vector<1x2xf32> to vector<8x2xf32>
    %30 = vector.broadcast %cst_12 : f32 to vector<8x2xf32>
    %31 = arith.select %27, %29, %30 : vector<8x2xi1>, vector<8x2xf32>
    %32 = arith.addf %12, %31 : vector<8x2xf32>
    %c2_i32_13 = arith.constant 2 : i32
    %33 = vector.broadcast %c2_i32_13 : i32 to vector<8x1xi32>
    %34 = arith.cmpi sge, %11, %33 : vector<8x1xi32>
    %c4_i32 = arith.constant 4 : i32
    %35 = vector.broadcast %c4_i32 : i32 to vector<8x1xi32>
    %36 = arith.cmpi slt, %11, %35 : vector<8x1xi32>
    %37 = arith.andi %34, %36 : vector<8x1xi1>
    %cst_14 = arith.constant 0.000000e+00 : f32
    %38 = vector.shape_cast %37 : vector<8x1xi1> to vector<8x1xi1>
    %39 = vector.broadcast %38 : vector<8x1xi1> to vector<8x2xi1>
    %40 = vector.broadcast %cst_14 : f32 to vector<8x2xf32>
    %41 = arith.select %39, %10, %40 : vector<8x2xi1>, vector<8x2xf32>
    %cst_15 = arith.constant dense<0.000000e+00> : vector<2xf32>
    %42 = vector.multi_reduction <add>, %41, %cst_15 [0] : vector<8x2xf32> to vector<2xf32>
    %43 = vector.shape_cast %42 : vector<2xf32> to vector<1x2xf32>
    %cst_16 = arith.constant 5.000000e-01 : f32
    %44 = vector.broadcast %cst_16 : f32 to vector<1x2xf32>
    %45 = arith.mulf %43, %44 : vector<1x2xf32>
    %cst_17 = arith.constant 0.000000e+00 : f32
    %46 = vector.shape_cast %37 : vector<8x1xi1> to vector<8x1xi1>
    %47 = vector.broadcast %46 : vector<8x1xi1> to vector<8x2xi1>
    %48 = vector.shape_cast %45 : vector<1x2xf32> to vector<1x2xf32>
    %49 = vector.broadcast %48 : vector<1x2xf32> to vector<8x2xf32>
    %50 = vector.broadcast %cst_17 : f32 to vector<8x2xf32>
    %51 = arith.select %47, %49, %50 : vector<8x2xi1>, vector<8x2xf32>
    %52 = arith.addf %32, %51 : vector<8x2xf32>
    %c4_i32_18 = arith.constant 4 : i32
    %53 = vector.broadcast %c4_i32_18 : i32 to vector<8x1xi32>
    %54 = arith.cmpi sge, %11, %53 : vector<8x1xi32>
    %c6_i32 = arith.constant 6 : i32
    %55 = vector.broadcast %c6_i32 : i32 to vector<8x1xi32>
    %56 = arith.cmpi slt, %11, %55 : vector<8x1xi32>
    %57 = arith.andi %54, %56 : vector<8x1xi1>
    %cst_19 = arith.constant 0.000000e+00 : f32
    %58 = vector.shape_cast %57 : vector<8x1xi1> to vector<8x1xi1>
    %59 = vector.broadcast %58 : vector<8x1xi1> to vector<8x2xi1>
    %60 = vector.broadcast %cst_19 : f32 to vector<8x2xf32>
    %61 = arith.select %59, %10, %60 : vector<8x2xi1>, vector<8x2xf32>
    %cst_20 = arith.constant dense<0.000000e+00> : vector<2xf32>
    %62 = vector.multi_reduction <add>, %61, %cst_20 [0] : vector<8x2xf32> to vector<2xf32>
    %63 = vector.shape_cast %62 : vector<2xf32> to vector<1x2xf32>
    %cst_21 = arith.constant 5.000000e-01 : f32
    %64 = vector.broadcast %cst_21 : f32 to vector<1x2xf32>
    %65 = arith.mulf %63, %64 : vector<1x2xf32>
    %cst_22 = arith.constant 0.000000e+00 : f32
    %66 = vector.shape_cast %57 : vector<8x1xi1> to vector<8x1xi1>
    %67 = vector.broadcast %66 : vector<8x1xi1> to vector<8x2xi1>
    %68 = vector.shape_cast %65 : vector<1x2xf32> to vector<1x2xf32>
    %69 = vector.broadcast %68 : vector<1x2xf32> to vector<8x2xf32>
    %70 = vector.broadcast %cst_22 : f32 to vector<8x2xf32>
    %71 = arith.select %67, %69, %70 : vector<8x2xi1>, vector<8x2xf32>
    %72 = arith.addf %52, %71 : vector<8x2xf32>
    %c6_i32_23 = arith.constant 6 : i32
    %73 = vector.broadcast %c6_i32_23 : i32 to vector<8x1xi32>
    %74 = arith.cmpi sge, %11, %73 : vector<8x1xi32>
    %c8_i32 = arith.constant 8 : i32
    %75 = vector.broadcast %c8_i32 : i32 to vector<8x1xi32>
    %76 = arith.cmpi slt, %11, %75 : vector<8x1xi32>
    %77 = arith.andi %74, %76 : vector<8x1xi1>
    %cst_24 = arith.constant 0.000000e+00 : f32
    %78 = vector.shape_cast %77 : vector<8x1xi1> to vector<8x1xi1>
    %79 = vector.broadcast %78 : vector<8x1xi1> to vector<8x2xi1>
    %80 = vector.broadcast %cst_24 : f32 to vector<8x2xf32>
    %81 = arith.select %79, %10, %80 : vector<8x2xi1>, vector<8x2xf32>
    %cst_25 = arith.constant dense<0.000000e+00> : vector<2xf32>
    %82 = vector.multi_reduction <add>, %81, %cst_25 [0] : vector<8x2xf32> to vector<2xf32>
    %83 = vector.shape_cast %82 : vector<2xf32> to vector<1x2xf32>
    %cst_26 = arith.constant 5.000000e-01 : f32
    %84 = vector.broadcast %cst_26 : f32 to vector<1x2xf32>
    %85 = arith.mulf %83, %84 : vector<1x2xf32>
    %cst_27 = arith.constant 0.000000e+00 : f32
    %86 = vector.shape_cast %77 : vector<8x1xi1> to vector<8x1xi1>
    %87 = vector.broadcast %86 : vector<8x1xi1> to vector<8x2xi1>
    %88 = vector.shape_cast %85 : vector<1x2xf32> to vector<1x2xf32>
    %89 = vector.broadcast %88 : vector<1x2xf32> to vector<8x2xf32>
    %90 = vector.broadcast %cst_27 : f32 to vector<8x2xf32>
    %91 = arith.select %87, %89, %90 : vector<8x2xi1>, vector<8x2xf32>
    %92 = arith.addf %72, %91 : vector<8x2xf32>
    %93 = arith.subf %10, %92 : vector<8x2xf32>
    %94 = arith.mulf %93, %93 : vector<8x2xf32>
    %cst_28 = arith.constant 0.000000e+00 : f32
    %95 = vector.broadcast %cst_28 : f32 to vector<8x2xf32>
    %c0_i32_29 = arith.constant 0 : i32
    %96 = vector.broadcast %c0_i32_29 : i32 to vector<8x1xi32>
    %97 = arith.cmpi sge, %11, %96 : vector<8x1xi32>
    %c2_i32_30 = arith.constant 2 : i32
    %98 = vector.broadcast %c2_i32_30 : i32 to vector<8x1xi32>
    %99 = arith.cmpi slt, %11, %98 : vector<8x1xi32>
    %100 = arith.andi %97, %99 : vector<8x1xi1>
    %cst_31 = arith.constant 0.000000e+00 : f32
    %101 = vector.shape_cast %100 : vector<8x1xi1> to vector<8x1xi1>
    %102 = vector.broadcast %101 : vector<8x1xi1> to vector<8x2xi1>
    %103 = vector.broadcast %cst_31 : f32 to vector<8x2xf32>
    %104 = arith.select %102, %94, %103 : vector<8x2xi1>, vector<8x2xf32>
    %cst_32 = arith.constant dense<0.000000e+00> : vector<2xf32>
    %105 = vector.multi_reduction <add>, %104, %cst_32 [0] : vector<8x2xf32> to vector<2xf32>
    %106 = vector.shape_cast %105 : vector<2xf32> to vector<1x2xf32>
    %cst_33 = arith.constant 1.000000e+00 : f32
    %107 = vector.broadcast %cst_33 : f32 to vector<1x2xf32>
    %108 = arith.mulf %106, %107 : vector<1x2xf32>
    %cst_34 = arith.constant 0.000000e+00 : f32
    %109 = vector.shape_cast %100 : vector<8x1xi1> to vector<8x1xi1>
    %110 = vector.broadcast %109 : vector<8x1xi1> to vector<8x2xi1>
    %111 = vector.shape_cast %108 : vector<1x2xf32> to vector<1x2xf32>
    %112 = vector.broadcast %111 : vector<1x2xf32> to vector<8x2xf32>
    %113 = vector.broadcast %cst_34 : f32 to vector<8x2xf32>
    %114 = arith.select %110, %112, %113 : vector<8x2xi1>, vector<8x2xf32>
    %115 = arith.addf %95, %114 : vector<8x2xf32>
    %c2_i32_35 = arith.constant 2 : i32
    %116 = vector.broadcast %c2_i32_35 : i32 to vector<8x1xi32>
    %117 = arith.cmpi sge, %11, %116 : vector<8x1xi32>
    %c4_i32_36 = arith.constant 4 : i32
    %118 = vector.broadcast %c4_i32_36 : i32 to vector<8x1xi32>
    %119 = arith.cmpi slt, %11, %118 : vector<8x1xi32>
    %120 = arith.andi %117, %119 : vector<8x1xi1>
    %cst_37 = arith.constant 0.000000e+00 : f32
    %121 = vector.shape_cast %120 : vector<8x1xi1> to vector<8x1xi1>
    %122 = vector.broadcast %121 : vector<8x1xi1> to vector<8x2xi1>
    %123 = vector.broadcast %cst_37 : f32 to vector<8x2xf32>
    %124 = arith.select %122, %94, %123 : vector<8x2xi1>, vector<8x2xf32>
    %cst_38 = arith.constant dense<0.000000e+00> : vector<2xf32>
    %125 = vector.multi_reduction <add>, %124, %cst_38 [0] : vector<8x2xf32> to vector<2xf32>
    %126 = vector.shape_cast %125 : vector<2xf32> to vector<1x2xf32>
    %cst_39 = arith.constant 1.000000e+00 : f32
    %127 = vector.broadcast %cst_39 : f32 to vector<1x2xf32>
    %128 = arith.mulf %126, %127 : vector<1x2xf32>
    %cst_40 = arith.constant 0.000000e+00 : f32
    %129 = vector.shape_cast %120 : vector<8x1xi1> to vector<8x1xi1>
    %130 = vector.broadcast %129 : vector<8x1xi1> to vector<8x2xi1>
    %131 = vector.shape_cast %128 : vector<1x2xf32> to vector<1x2xf32>
    %132 = vector.broadcast %131 : vector<1x2xf32> to vector<8x2xf32>
    %133 = vector.broadcast %cst_40 : f32 to vector<8x2xf32>
    %134 = arith.select %130, %132, %133 : vector<8x2xi1>, vector<8x2xf32>
    %135 = arith.addf %115, %134 : vector<8x2xf32>
    %c4_i32_41 = arith.constant 4 : i32
    %136 = vector.broadcast %c4_i32_41 : i32 to vector<8x1xi32>
    %137 = arith.cmpi sge, %11, %136 : vector<8x1xi32>
    %c6_i32_42 = arith.constant 6 : i32
    %138 = vector.broadcast %c6_i32_42 : i32 to vector<8x1xi32>
    %139 = arith.cmpi slt, %11, %138 : vector<8x1xi32>
    %140 = arith.andi %137, %139 : vector<8x1xi1>
    %cst_43 = arith.constant 0.000000e+00 : f32
    %141 = vector.shape_cast %140 : vector<8x1xi1> to vector<8x1xi1>
    %142 = vector.broadcast %141 : vector<8x1xi1> to vector<8x2xi1>
    %143 = vector.broadcast %cst_43 : f32 to vector<8x2xf32>
    %144 = arith.select %142, %94, %143 : vector<8x2xi1>, vector<8x2xf32>
    %cst_44 = arith.constant dense<0.000000e+00> : vector<2xf32>
    %145 = vector.multi_reduction <add>, %144, %cst_44 [0] : vector<8x2xf32> to vector<2xf32>
    %146 = vector.shape_cast %145 : vector<2xf32> to vector<1x2xf32>
    %cst_45 = arith.constant 1.000000e+00 : f32
    %147 = vector.broadcast %cst_45 : f32 to vector<1x2xf32>
    %148 = arith.mulf %146, %147 : vector<1x2xf32>
    %cst_46 = arith.constant 0.000000e+00 : f32
    %149 = vector.shape_cast %140 : vector<8x1xi1> to vector<8x1xi1>
    %150 = vector.broadcast %149 : vector<8x1xi1> to vector<8x2xi1>
    %151 = vector.shape_cast %148 : vector<1x2xf32> to vector<1x2xf32>
    %152 = vector.broadcast %151 : vector<1x2xf32> to vector<8x2xf32>
    %153 = vector.broadcast %cst_46 : f32 to vector<8x2xf32>
    %154 = arith.select %150, %152, %153 : vector<8x2xi1>, vector<8x2xf32>
    %155 = arith.addf %135, %154 : vector<8x2xf32>
    %c6_i32_47 = arith.constant 6 : i32
    %156 = vector.broadcast %c6_i32_47 : i32 to vector<8x1xi32>
    %157 = arith.cmpi sge, %11, %156 : vector<8x1xi32>
    %c8_i32_48 = arith.constant 8 : i32
    %158 = vector.broadcast %c8_i32_48 : i32 to vector<8x1xi32>
    %159 = arith.cmpi slt, %11, %158 : vector<8x1xi32>
    %160 = arith.andi %157, %159 : vector<8x1xi1>
    %cst_49 = arith.constant 0.000000e+00 : f32
    %161 = vector.shape_cast %160 : vector<8x1xi1> to vector<8x1xi1>
    %162 = vector.broadcast %161 : vector<8x1xi1> to vector<8x2xi1>
    %163 = vector.broadcast %cst_49 : f32 to vector<8x2xf32>
    %164 = arith.select %162, %94, %163 : vector<8x2xi1>, vector<8x2xf32>
    %cst_50 = arith.constant dense<0.000000e+00> : vector<2xf32>
    %165 = vector.multi_reduction <add>, %164, %cst_50 [0] : vector<8x2xf32> to vector<2xf32>
    %166 = vector.shape_cast %165 : vector<2xf32> to vector<1x2xf32>
    %cst_51 = arith.constant 1.000000e+00 : f32
    %167 = vector.broadcast %cst_51 : f32 to vector<1x2xf32>
    %168 = arith.mulf %166, %167 : vector<1x2xf32>
    %cst_52 = arith.constant 0.000000e+00 : f32
    %169 = vector.shape_cast %160 : vector<8x1xi1> to vector<8x1xi1>
    %170 = vector.broadcast %169 : vector<8x1xi1> to vector<8x2xi1>
    %171 = vector.shape_cast %168 : vector<1x2xf32> to vector<1x2xf32>
    %172 = vector.broadcast %171 : vector<1x2xf32> to vector<8x2xf32>
    %173 = vector.broadcast %cst_52 : f32 to vector<8x2xf32>
    %174 = arith.select %170, %172, %173 : vector<8x2xi1>, vector<8x2xf32>
    %175 = arith.addf %155, %174 : vector<8x2xf32>
    %cst_53 = arith.constant 9.99999974E-6 : f32
    %176 = vector.broadcast %cst_53 : f32 to vector<8x2xf32>
    %177 = arith.addf %175, %176 : vector<8x2xf32>
    %178 = math.rsqrt %177 : vector<8x2xf32>
    %179 = arith.mulf %93, %178 : vector<8x2xf32>
    %180 = vector.broadcast %2 : vector<8x1xf32> to vector<8x2xf32>
    %181 = arith.mulf %179, %180 : vector<8x2xf32>
    %182 = vector.broadcast %3 : vector<8x1xf32> to vector<8x2xf32>
    %183 = arith.addf %181, %182 : vector<8x2xf32>
    %184 = vector.extract_strided_slice %183 {offsets = [0, 0], sizes = [8, 1], strides = [1, 1]} : vector<8x2xf32> to vector<8x1xf32>
    %185 = vector.extract_strided_slice %183 {offsets = [0, 1], sizes = [8, 1], strides = [1, 1]} : vector<8x2xf32> to vector<8x1xf32>
    %186 = arith.addf %184, %185 : vector<8x1xf32>
    %187 = arith.negf %186 : vector<8x1xf32>
    %188 = math.exp %187 : vector<8x1xf32>
    %cst_54 = arith.constant 1.000000e+00 : f32
    %189 = vector.broadcast %cst_54 : f32 to vector<8x1xf32>
    %190 = arith.addf %189, %188 : vector<8x1xf32>
    %191 = arith.divf %189, %190 : vector<8x1xf32>
    %192 = vector.broadcast %191 : vector<8x1xf32> to vector<8x256xf32>
    %193 = arith.mulf %1, %192 : vector<8x256xf32>
    %c0_55 = arith.constant 0 : index
    %c0_56 = arith.constant 0 : index
    %c0_57 = arith.constant 0 : index
    %194 = vector.load %arg4[%c0_55, %c0_56, %c0_57] : memref<1x8x256xf32, #tpu.memory_space<vmem>>, vector<1x8x256xf32>
    %195 = vector.shape_cast %194 : vector<1x8x256xf32> to vector<8x256xf32>
    %196 = vector.shape_cast %193 : vector<8x256xf32> to vector<1x8x256xf32>
    tpu.vector_store %arg4[%c0_55, %c0_56, %c0_57], %196 {strides = array<i32>} : memref<1x8x256xf32, #tpu.memory_space<vmem>>, vector<1x8x256xf32>,
    %c0_58 = arith.constant 0 : index
    %c0_59 = arith.constant 0 : index
    %c0_60 = arith.constant 0 : index
    %197 = vector.load %arg5[%c0_58, %c0_59, %c0_60] : memref<1x8x1xf32, #tpu.memory_space<vmem>>, vector<1x8x1xf32>
    %198 = vector.shape_cast %197 : vector<1x8x1xf32> to vector<8x1xf32>
    %199 = vector.shape_cast %191 : vector<8x1xf32> to vector<1x8x1xf32>
    tpu.vector_store %arg5[%c0_58, %c0_59, %c0_60], %199 {strides = array<i32>} : memref<1x8x1xf32, #tpu.memory_space<vmem>>, vector<1x8x1xf32>,
    return
  }
  func.func @transform_0(%arg0: i32) -> (i32, i32, i32) {
    %c0_i32 = arith.constant 0 : i32
    %c0_i32_0 = arith.constant 0 : i32
    %c0_i32_1 = arith.constant 0 : i32
    return %arg0, %c0_i32, %c0_i32_0 : i32, i32, i32
  }
  func.func @transform_1(%arg0: i32) -> (i32, i32) {
    %c0_i32 = arith.constant 0 : i32
    %c0_i32_0 = arith.constant 0 : i32
    %c0_i32_1 = arith.constant 0 : i32
    return %c0_i32, %c0_i32_0 : i32, i32
  }
  func.func @transform_2(%arg0: i32) -> (i32, i32) {
    %c0_i32 = arith.constant 0 : i32
    %c0_i32_0 = arith.constant 0 : i32
    %c0_i32_1 = arith.constant 0 : i32
    return %c0_i32, %c0_i32_0 : i32, i32
  }
  func.func @transform_3(%arg0: i32) -> (i32, i32, i32) {
    %c0_i32 = arith.constant 0 : i32
    %c0_i32_0 = arith.constant 0 : i32
    %c0_i32_1 = arith.constant 0 : i32
    return %arg0, %c0_i32, %c0_i32_0 : i32, i32, i32
  }
  func.func @transform_4(%arg0: i32) -> (i32, i32, i32) {
    %c0_i32 = arith.constant 0 : i32
    %c0_i32_0 = arith.constant 0 : i32
    %c0_i32_1 = arith.constant 0 : i32
    return %arg0, %c0_i32, %c0_i32_0 : i32, i32, i32
  }
}

</mosaic_0001>

<llo_original>
// kernel: tpu_custom_call.1
$region0: #{tpu_custom_call.1}
  #allocation0 [shape = 'u32[]', space=smem, size = 0x4, offset = 0x4, fixed_abs, tag = 'smem constant byte address 0x4 - core index']
  #allocation1 [shape = 'u32[144,128]{1,0:T(1,128)}', space=vmem, size = 0x12000, scoped, tag = 'internal scratch']
  %s0 = inlined_call_operand.hbm [shape: f32[2,8,256], index: 0, kind: input, shape index: {}]
  %s1 = inlined_call_operand.vmem [shape: f32[8,1], index: 1, kind: input, shape index: {}]
  %s2 = inlined_call_operand.vmem [shape: f32[8,1], index: 2, kind: input, shape index: {}]
  %s3 = inlined_call_operand.hbm [shape: f32[2,8,256], index: 3, kind: output, shape index: {0}]
  %s4 = inlined_call_operand.vmem [shape: f32[2,8,1], index: 4, kind: output, shape index: {1}]
  %5 = xla_tuple %s3, %s4
  %s6 = sld [smem:[#allocation0]]
  $region57: #{tpu_custom_call.1} parent=0
    _
  %s8 = ssub.s32 1, %s6
  %s9 = scalar_select 0, %s8, %s6
  $region1: #{tpu_custom_call.1} parent=0
    #allocation2 [shape = 'u8[16384]{0}', space=vmem, size = 0x4000, scoped, tag = 'input window, operand 0']
    #allocation3 [shape = 's32[2]{0}', space=sflag, size = 0x8, scoped, tag = 'scoped memory for tpu_custom_call.1']
    #allocation4 [shape = 's32[2]{0}', space=sflag, size = 0x8, scoped, tag = 'scoped memory for tpu_custom_call.1']
    #allocation5 [shape = 'u8[16384]{0}', space=vmem, size = 0x4000, scoped, tag = 'output window, operand 0']
    %10 = vsyncpa [#allocation3], 0
    %s11 = scalar_lea.sflag [#allocation3], 1
    %12 = vsyncpa %s11, 0
    %13 = vsyncpa [#allocation4], 0
    %s14 = scalar_lea.sflag [#allocation4], 1
    %15 = vsyncpa %s14, 0
    loop: start=0, step=1, limit=4
    $region2: #{tpu_custom_call.1} parent=1 // loop_pre_header
      _
    $region3: #{tpu_custom_call.1} parent=1 // loop_header
      %s17 = sphi 0, %s21
      %p18 = scmp.ge.s32.totalorder %s17, 4
      %s27 = sphi 0, %s29
      %s30 = sphi 0, %s27
      %s31 = sphi 0, %s30
      %s47 = sphi 0, %s31
      %s51 = sphi 0, %s51
      %s53 = sphi 0, %s51
      %s54 = sphi 0, %s53
      %s68 = sphi 0, %s54
      %s72 = sphi 0, %s72
      %s74 = sphi 0, %s72
      %s75 = sphi 0, %s74
      %s89 = sphi 0, %s75
      %s95 = sphi 0, %s97
      %s98 = sphi 0, %s95
      %s99 = sphi 0, %s98
      %s115 = sphi 0, %s99
      %s121 = sphi 0, %s123
      %s124 = sphi 0, %s121
      %s125 = sphi 0, %s124
      %s141 = sphi 0, %s125
    $region4: #{tpu_custom_call.1} parent=1 // loop_header_branch
      %20 = sbr.rel (%p18) target = $region8
    $region5: #{tpu_custom_call.1} parent=1 // loop_body
      %s22 = ssub.s32 %s17, 1
      %s23 = ssub.s32 %s17, 2
      %s24 = sadd.s32 %s17, 1
      %s25 = ssub.s32 %s17, %s24
      %p26 = scmp.eq.s32.totalorder %s25, 0
      %s28 = sadd.s32 %s27, 1
      %s29 = scalar_select %p26, %s27, %s28
      %p32 = pneg %p26
      %p33 = scmp.eq.s32.totalorder %s17, 1
      %p34 = por %p32, %p33
      %p35 = scmp.ne.s32.totalorder %s27, %s30
      %p36 = scmp.eq.s32.totalorder %s17, 0
      %p37 = por %p35, %p36
      %p38 = scmp.ne.s32.totalorder %s27, %s30
      %p39 = scmp.eq.s32.totalorder %s22, 1
      %p40 = por %p38, %p39
      %p41 = scmp.ne.s32.totalorder %s30, %s31
      %p42 = scmp.eq.s32.totalorder %s22, 0
      %p43 = por %p41, %p42
      %p44 = scmp.ne.s32.totalorder %s30, %s31
      %p45 = scmp.eq.s32.totalorder %s23, 1
      %p46 = por %p44, %p45
      %p48 = scmp.ne.s32.totalorder %s31, %s47
      %p49 = scmp.eq.s32.totalorder %s23, 0
      %p50 = por %p48, %p49
      %s52 = sadd.s32 %s51, 1
      %p55 = scmp.eq.s32.totalorder %s17, 1
      %p56 = scmp.ne.s32.totalorder %s51, %s53
      %p57 = scmp.eq.s32.totalorder %s17, 0
      %p58 = por %p56, %p57
      %p59 = scmp.ne.s32.totalorder %s51, %s53
      %p60 = scmp.eq.s32.totalorder %s22, 1
      %p61 = por %p59, %p60
      %p62 = scmp.ne.s32.totalorder %s53, %s54
      %p63 = scmp.eq.s32.totalorder %s22, 0
      %p64 = por %p62, %p63
      %p65 = scmp.ne.s32.totalorder %s53, %s54
      %p66 = scmp.eq.s32.totalorder %s23, 1
      %p67 = por %p65, %p66
      %p69 = scmp.ne.s32.totalorder %s54, %s68
      %p70 = scmp.eq.s32.totalorder %s23, 0
      %p71 = por %p69, %p70
      %s73 = sadd.s32 %s72, 1
      %p76 = scmp.eq.s32.totalorder %s17, 1
      %p77 = scmp.ne.s32.totalorder %s72, %s74
      %p78 = scmp.eq.s32.totalorder %s17, 0
      %p79 = por %p77, %p78
      %p80 = scmp.ne.s32.totalorder %s72, %s74
      %p81 = scmp.eq.s32.totalorder %s22, 1
      %p82 = por %p80, %p81
      %p83 = scmp.ne.s32.totalorder %s74, %s75
      %p84 = scmp.eq.s32.totalorder %s22, 0
      %p85 = por %p83, %p84
      %p86 = scmp.ne.s32.totalorder %s74, %s75
      %p87 = scmp.eq.s32.totalorder %s23, 1
      %p88 = por %p86, %p87
      %p90 = scmp.ne.s32.totalorder %s75, %s89
      %p91 = scmp.eq.s32.totalorder %s23, 0
      %p92 = por %p90, %p91
      %s93 = ssub.s32 %s17, %s24
      %p94 = scmp.eq.s32.totalorder %s93, 0
      %s96 = sadd.s32 %s95, 1
      %s97 = scalar_select %p94, %s95, %s96
      %p100 = pneg %p94
      %p101 = scmp.eq.s32.totalorder %s17, 1
      %p102 = por %p100, %p101
      %p103 = scmp.ne.s32.totalorder %s95, %s98
      %p104 = scmp.eq.s32.totalorder %s17, 0
      %p105 = por %p103, %p104
      %p106 = scmp.ne.s32.totalorder %s95, %s98
      %p107 = scmp.eq.s32.totalorder %s22, 1
      %p108 = por %p106, %p107
      %p109 = scmp.ne.s32.totalorder %s98, %s99
      %p110 = scmp.eq.s32.totalorder %s22, 0
      %p111 = por %p109, %p110
      %p112 = scmp.ne.s32.totalorder %s98, %s99
      %p113 = scmp.eq.s32.totalorder %s23, 1
      %p114 = por %p112, %p113
      %p116 = scmp.ne.s32.totalorder %s99, %s115
      %p117 = scmp.eq.s32.totalorder %s23, 0
      %p118 = por %p116, %p117
      %s119 = ssub.s32 %s17, %s24
      %p120 = scmp.eq.s32.totalorder %s119, 0
      %s122 = sadd.s32 %s121, 1
      %s123 = scalar_select %p120, %s121, %s122
      %p126 = pneg %p120
      %p127 = scmp.eq.s32.totalorder %s17, 1
      %p128 = por %p126, %p127
      %p129 = scmp.ne.s32.totalorder %s121, %s124
      %p130 = scmp.eq.s32.totalorder %s17, 0
      %p131 = por %p129, %p130
      %p132 = scmp.ne.s32.totalorder %s121, %s124
      %p133 = scmp.eq.s32.totalorder %s22, 1
      %p134 = por %p132, %p133
      %p135 = scmp.ne.s32.totalorder %s124, %s125
      %p136 = scmp.eq.s32.totalorder %s22, 0
      %p137 = por %p135, %p136
      %p138 = scmp.ne.s32.totalorder %s124, %s125
      %p139 = scmp.eq.s32.totalorder %s23, 1
      %p140 = por %p138, %p139
      %p142 = scmp.ne.s32.totalorder %s125, %s141
      %p143 = scmp.eq.s32.totalorder %s23, 0
      %p144 = por %p142, %p143
      %p145 = scmp.le.s32.totalorder 1, %s17
      %p146 = scmp.lt.s32.totalorder %s17, 3
      %p147 = pnand %p145, %p146
      %p148 = pneg %p147
      // Predicated region
      $region9: #{tpu_custom_call.1} parent=5 // pred_check
        _
      $region10: #{tpu_custom_call.1} parent=5 // pred_check_branch
        %150 = sbr.rel (%p147) target = $region12
      $region11: #{tpu_custom_call.1} parent=5 // pred_region
        %s151 = ssub.s32 %s17, 1
        // Predicated region
        $region13: #{tpu_custom_call.1} parent=11 // pred_check
          %p152 = pneg %p64
        $region14: #{tpu_custom_call.1} parent=11 // pred_check_branch
          %154 = sbr.rel (%p152) target = $region16
        $region15: #{tpu_custom_call.1} parent=11 // pred_region
          _
        $region16: #{tpu_custom_call.1} parent=11 // pred_fallthru
          _
        // Predicated region
        $region17: #{tpu_custom_call.1} parent=11 // pred_check
          %p155 = pneg %p85
        $region18: #{tpu_custom_call.1} parent=11 // pred_check_branch
          %157 = sbr.rel (%p155) target = $region20
        $region19: #{tpu_custom_call.1} parent=11 // pred_region
          _
        $region20: #{tpu_custom_call.1} parent=11 // pred_fallthru
          _
      $region12: #{tpu_custom_call.1} parent=5 // pred_fallthru
        _
      %p158 = scmp.lt.s32.totalorder %s17, 2
      // Predicated region
      $region21: #{tpu_custom_call.1} parent=5 // pred_check
        %p159 = pneg %p158
      $region22: #{tpu_custom_call.1} parent=5 // pred_check_branch
        %161 = sbr.rel (%p159) target = $region24
      $region23: #{tpu_custom_call.1} parent=5 // pred_region
        // Predicated region
        $region25: #{tpu_custom_call.1} parent=23 // pred_check
          %p162 = pneg %p37
        $region26: #{tpu_custom_call.1} parent=23 // pred_check_branch
          %164 = sbr.rel (%p162) target = $region28
        $region27: #{tpu_custom_call.1} parent=23 // pred_region
          %s165 = sand.u32 %s27, 1
          %s166 = scalar_lea.sflag [#allocation3], %s165
          %s167 = sand.u32 %s27, 1
          %s168 = smul.addr %s167, 16
          %s169 = scalar_lea.vmem [#allocation2], %s168
          %s171 = ssub.s32 256, 256
          %172 = vsyncadd %s166, %s171
          %s173 = smul.addr %s17, 2
          %s174 = smul.addr %s173, 128
          %s175 = scalar_lea.hbm %s0, %s174
          %s177 = sshll.u32 %s169, 4
          %s178 = int_to_ptr.vmem [resolvable:$true] %s177
          %180 = dma.hbm_to_vmem [thread:$0]  %s175, 256, %s178, %s166
        $region28: #{tpu_custom_call.1} parent=23 // pred_fallthru
          _
      $region24: #{tpu_custom_call.1} parent=5 // pred_fallthru
        _
      %p181 = scmp.le.s32.totalorder 1, %s17
      %p182 = scmp.lt.s32.totalorder %s17, 3
      %p183 = pnand %p181, %p182
      %p184 = pneg %p183
      // Predicated region
      $region29: #{tpu_custom_call.1} parent=5 // pred_check
        _
      $region30: #{tpu_custom_call.1} parent=5 // pred_check_branch
        %186 = sbr.rel (%p183) target = $region32
      $region31: #{tpu_custom_call.1} parent=5 // pred_region
        %s187 = ssub.s32 %s17, 1
        %s188 = sand.u32 %s30, 1
        %s189 = scalar_lea.sflag [#allocation3], %s188
        %s190 = sand.u32 %s30, 1
        %s191 = smul.addr %s190, 16
        %s192 = scalar_lea.vmem [#allocation2], %s191
        // Predicated region
        $region33: #{tpu_custom_call.1} parent=31 // pred_check
          %p193 = pneg %p43
        $region34: #{tpu_custom_call.1} parent=31 // pred_check_branch
          %195 = sbr.rel (%p193) target = $region36
        $region35: #{tpu_custom_call.1} parent=31 // pred_region
          %196 = dma.done %s189, 256
        $region36: #{tpu_custom_call.1} parent=31 // pred_fallthru
          _
        %s197 = sand.u32 %s30, 1
        %s198 = scalar_lea.sflag [#allocation3], %s197
        %s199 = sand.u32 %s30, 1
        %s200 = smul.addr %s199, 16
        %s201 = scalar_lea.vmem [#allocation2], %s200
        %p202 = pneg %p43
        %p203 = pneg %p40
        %p204 = pneg %p64
        %p205 = pneg %p61
        %p206 = pneg %p85
        %p207 = pneg %p82
        %p208 = pneg %p111
        %p209 = pneg %p108
        %s210 = sand.u32 %s98, 1
        %s211 = scalar_lea.sflag [#allocation4], %s210
        %s212 = sand.u32 %s98, 1
        %s213 = smul.addr %s212, 16
        %s214 = scalar_lea.vmem [#allocation5], %s213
        %p215 = pneg %p137
        %p216 = pneg %p134
        %p217 = scmp.lt.s32.totalorder %s22, 1
        %s218 = scalar_select %p217, %s22, 1
        %s219 = smul.addr %s218, 8
        %s220 = scalar_lea.vmem %s4, %s219
        %p221 = scmp.lt.s32.totalorder %s22, 1
        %s222 = scalar_select %p221, %s22, 1
        %s223 = smul.addr %s222, 8
        %s224 = scalar_lea.vmem %s4, %s223
        %v225 = vld [vmem:[%s192] sm:$0xff]
        %v226 = vld [vmem:[%s192 + $0x8] sm:$0xff]
        %v227 = vld [vmem:[%s1] sm:$0xff]
        %v228 = vld [vmem:[%s2] sm:$0xff]
        %v229 = vadd.f32 %v225, %v226
        %230 = vadd.xlane.f32.xlu0 %v229
        %v231 = vpop.xlane.xlu0 %230
        %v232 = vmul.f32 %v231, 0.00390625
        %v233 = vmax.f32 %v225, %v226
        %234 = vmax.xlane.f32.xlu0 %v233
        %v235 = vpop.xlane.xlu0 %234
        %vm236 = vcmask 7168
        %v237 = vsel %vm236, %v232, %v235
        %v238 = vlaneseq
        %v239 = vshrl.u32 %v238, 7
        %vm240 = vcmp.ge.s32.totalorder %v239, 0
        %vm241 = vcmp.lt.s32.totalorder %v239, 2
        %vm242 = vmand %vm240, %vm241
        %v243 = vsel %vm242, 1, 0
        %vm244 = vcmp.eq.s32.totalorder %v243, 1
        %v245 = vsel %vm244, %v237, 0.0
        %vm246 = vcmask 15360
        %v247 = vsel %vm246, %v245, 0.0
        %v248 = vrot.slane %v247, 4
        %v249 = vadd.f32 %v247, %v248
        %v250 = vrot.slane %v249, 2
        %v251 = vadd.f32 %v249, %v250
        %v252 = vrot.slane %v251, 1
        %v253 = vadd.f32 %v251, %v252
        %v254 = vmul.f32 %v253, 0.5
        %v255 = vsel %vm244, %v254, 0.0
        %v256 = vadd.f32 %v255, 0.0
        %vm257 = vcmp.ge.s32.totalorder %v239, 2
        %vm258 = vcmp.lt.s32.totalorder %v239, 4
        %vm259 = vmand %vm257, %vm258
        %v260 = vsel %vm259, 1, 0
        %vm261 = vcmp.eq.s32.totalorder %v260, 1
        %v262 = vsel %vm261, %v237, 0.0
        %v263 = vsel %vm246, %v262, 0.0
        %v264 = vrot.slane %v263, 4
        %v265 = vadd.f32 %v263, %v264
        %v266 = vrot.slane %v265, 2
        %v267 = vadd.f32 %v265, %v266
        %v268 = vrot.slane %v267, 1
        %v269 = vadd.f32 %v267, %v268
        %v270 = vmul.f32 %v269, 0.5
        %v271 = vsel %vm261, %v270, 0.0
        %v272 = vadd.f32 %v256, %v271
        %vm273 = vcmp.ge.s32.totalorder %v239, 4
        %vm274 = vcmp.lt.s32.totalorder %v239, 6
        %vm275 = vmand %vm273, %vm274
        %v276 = vsel %vm275, 1, 0
        %vm277 = vcmp.eq.s32.totalorder %v276, 1
        %v278 = vsel %vm277, %v237, 0.0
        %v279 = vsel %vm246, %v278, 0.0
        %v280 = vrot.slane %v279, 4
        %v281 = vadd.f32 %v279, %v280
        %v282 = vrot.slane %v281, 2
        %v283 = vadd.f32 %v281, %v282
        %v284 = vrot.slane %v283, 1
        %v285 = vadd.f32 %v283, %v284
        %v286 = vmul.f32 %v285, 0.5
        %v287 = vsel %vm277, %v286, 0.0
        %v288 = vadd.f32 %v272, %v287
        %vm289 = vcmp.ge.s32.totalorder %v239, 6
        %vm290 = vcmp.lt.s32.totalorder %v239, 8
        %vm291 = vmand %vm289, %vm290
        %v292 = vsel %vm291, 1, 0
        %vm293 = vcmp.eq.s32.totalorder %v292, 1
        %v294 = vsel %vm293, %v237, 0.0
        %v295 = vsel %vm246, %v294, 0.0
        %v296 = vrot.slane %v295, 4
        %v297 = vadd.f32 %v295, %v296
        %v298 = vrot.slane %v297, 2
        %v299 = vadd.f32 %v297, %v298
        %v300 = vrot.slane %v299, 1
        %v301 = vadd.f32 %v299, %v300
        %v302 = vmul.f32 %v301, 0.5
        %v303 = vsel %vm293, %v302, 0.0
        %v304 = vadd.f32 %v288, %v303
        %v305 = vsub.f32 %v237, %v304
        %v306 = vmul.f32 %v305, %v305
        %v307 = vsel %vm244, %v306, 0.0
        %v308 = vsel %vm246, %v307, 0.0
        %v309 = vrot.slane %v308, 4
        %v310 = vadd.f32 %v308, %v309
        %v311 = vrot.slane %v310, 2
        %v312 = vadd.f32 %v310, %v311
        %v313 = vrot.slane %v312, 1
        %v314 = vadd.f32 %v312, %v313
        %v315 = vsel %vm244, %v314, 0.0
        %v316 = vadd.f32 %v315, 0.0
        %v317 = vsel %vm261, %v306, 0.0
        %v318 = vsel %vm246, %v317, 0.0
        %v319 = vrot.slane %v318, 4
        %v320 = vadd.f32 %v318, %v319
        %v321 = vrot.slane %v320, 2
        %v322 = vadd.f32 %v320, %v321
        %v323 = vrot.slane %v322, 1
        %v324 = vadd.f32 %v322, %v323
        %v325 = vsel %vm261, %v324, 0.0
        %v326 = vadd.f32 %v316, %v325
        %v327 = vsel %vm277, %v306, 0.0
        %v328 = vsel %vm246, %v327, 0.0
        %v329 = vrot.slane %v328, 4
        %v330 = vadd.f32 %v328, %v329
        %v331 = vrot.slane %v330, 2
        %v332 = vadd.f32 %v330, %v331
        %v333 = vrot.slane %v332, 1
        %v334 = vadd.f32 %v332, %v333
        %v335 = vsel %vm277, %v334, 0.0
        %v336 = vadd.f32 %v326, %v335
        %v337 = vsel %vm293, %v306, 0.0
        %v338 = vsel %vm246, %v337, 0.0
        %v339 = vrot.slane %v338, 4
        %v340 = vadd.f32 %v338, %v339
        %v341 = vrot.slane %v340, 2
        %v342 = vadd.f32 %v340, %v341
        %v343 = vrot.slane %v342, 1
        %v344 = vadd.f32 %v342, %v343
        %v345 = vsel %vm293, %v344, 0.0
        %v346 = vadd.f32 %v336, %v345
        %v347 = vadd.f32 %v346, 1e-05
        %v348 = vrsqrt.pop %v347
        %v349 = vmul.f32 %v305, %v348
        %351 = vset.pattern.permute.xlu0 0
        %352 = vperm.xlu0 %351, %v227
        %v353 = vpop.permute.xlu0 %352
        %v355 = vmul.f32 %v349, %v353
        %357 = vset.pattern.permute.xlu0 0
        %358 = vperm.xlu0 %357, %v228
        %v359 = vpop.permute.xlu0 %358
        %v361 = vadd.f32 %v355, %v359
        %363 = vrot.lane.b32.xlu0 %v361, 127
        %v364 = vpop.permute.xlu0 %363
        %v366 = vadd.f32 %v361, %v364
        %v367 = vxor.u32 %v366, 2147483648
        %v368 = vmul.f32 %v367, 1.442695
        %v369 = vpow.pop %v368
        %v370 = vadd.f32 %v369, 1.0
        %v371 = vrcp.pop %v370
        %v372 = vmul.f32 1.0, %v371
        %374 = vset.pattern.permute.xlu0 0
        %375 = vperm.xlu0 %374, %v372
        %v376 = vpop.permute.xlu0 %375
        %v378 = vmul.f32 %v225, %v376
        %v379 = vmul.f32 %v226, %v376
        %380 = vst [vmem:[%s214] sm:$0xff] %v378
        %381 = vst [vmem:[%s214 + $0x8] sm:$0xff] %v379
        %382 = vst.msk [vmem:[%s224] sm:$0xff] %vm236, %v372
        %s383 = sand.u32 %s98, 1
        %s384 = scalar_lea.sflag [#allocation4], %s383
        %s385 = sand.u32 %s98, 1
        %s386 = smul.addr %s385, 16
        %s387 = scalar_lea.vmem [#allocation5], %s386
        %p388 = scmp.lt.s32.totalorder %s22, 1
        %s389 = scalar_select %p388, %s22, 1
        %s390 = smul.addr %s389, 8
        %s391 = scalar_lea.vmem %s4, %s390
        // Predicated region
        $region37: #{tpu_custom_call.1} parent=31 // pred_check
          %p392 = pneg %p108
        $region38: #{tpu_custom_call.1} parent=31 // pred_check_branch
          %394 = sbr.rel (%p392) target = $region40
        $region39: #{tpu_custom_call.1} parent=31 // pred_region
          %s396 = ssub.s32 256, 256
          %397 = vsyncadd %s384, %s396
          %s398 = smul.addr %s22, 2
          %s399 = smul.addr %s398, 128
          %s400 = scalar_lea.hbm %s3, %s399
          %s402 = sshll.u32 %s387, 4
          %s403 = int_to_ptr.vmem [resolvable:$true] %s402
          %405 = dma.vmem_to_hbm [thread:$0]  %s403, 256, %s400, %s384
        $region40: #{tpu_custom_call.1} parent=31 // pred_fallthru
          _
        // Predicated region
        $region41: #{tpu_custom_call.1} parent=31 // pred_check
          %p406 = pneg %p134
        $region42: #{tpu_custom_call.1} parent=31 // pred_check_branch
          %408 = sbr.rel (%p406) target = $region44
        $region43: #{tpu_custom_call.1} parent=31 // pred_region
          _
        $region44: #{tpu_custom_call.1} parent=31 // pred_fallthru
          _
      $region32: #{tpu_custom_call.1} parent=5 // pred_fallthru
        _
      %p409 = scmp.le.s32.totalorder 2, %s17
      // Predicated region
      $region45: #{tpu_custom_call.1} parent=5 // pred_check
        %p410 = pneg %p409
      $region46: #{tpu_custom_call.1} parent=5 // pred_check_branch
        %412 = sbr.rel (%p410) target = $region48
      $region47: #{tpu_custom_call.1} parent=5 // pred_region
        %s413 = ssub.s32 %s17, 2
        // Predicated region
        $region49: #{tpu_custom_call.1} parent=47 // pred_check
          %p414 = pneg %p114
        $region50: #{tpu_custom_call.1} parent=47 // pred_check_branch
          %416 = sbr.rel (%p414) target = $region52
        $region51: #{tpu_custom_call.1} parent=47 // pred_region
          %s417 = sand.u32 %s99, 1
          %s418 = scalar_lea.sflag [#allocation4], %s417
          %s419 = sand.u32 %s99, 1
          %s420 = smul.addr %s419, 16
          %s421 = scalar_lea.vmem [#allocation5], %s420
          %422 = dma.done %s418, 256
        $region52: #{tpu_custom_call.1} parent=47 // pred_fallthru
          _
        // Predicated region
        $region53: #{tpu_custom_call.1} parent=47 // pred_check
          %p423 = pneg %p140
        $region54: #{tpu_custom_call.1} parent=47 // pred_check_branch
          %425 = sbr.rel (%p423) target = $region56
        $region55: #{tpu_custom_call.1} parent=47 // pred_region
          %p426 = scmp.lt.s32.totalorder %s23, 1
          %s427 = scalar_select %p426, %s23, 1
          %s428 = smul.addr %s427, 8
          %s429 = scalar_lea.vmem %s4, %s428
        $region56: #{tpu_custom_call.1} parent=47 // pred_fallthru
          _
      $region48: #{tpu_custom_call.1} parent=5 // pred_fallthru
        _
    $region6: #{tpu_custom_call.1} parent=1 // loop_footer
      %s21 = sadd.s32 1, %s17
    $region7: #{tpu_custom_call.1} parent=1 // loop_footer_branch
      %16 = sbr.rel target = $region3
    $region8: #{tpu_custom_call.1} parent=1 // loop_exit
      _
    %430 = vsyncpa [#allocation3], 1
    %s431 = scalar_lea.sflag [#allocation3], 1
    %432 = vsyncpa %s431, 1
    %433 = vsyncpa [#allocation4], 1
    %s434 = scalar_lea.sflag [#allocation4], 1
    %435 = vsyncpa %s434, 1

</llo_original>
